<compile_context>
chip_gen: v7x
topology: tpu7x:2x2x1
jax: 0.10.0
libtpu: 0.0.40
codegen_flags: <defaults>
</compile_context>

<pallas_src>
import functools

import jax
import jax.numpy as jnp
from jax.experimental import pallas as pl
from jax.experimental.pallas import tpu as pltpu

HIDDEN = 64              # per-head hidden width (matches nn.Linear(., 64))
OUT_PAD = 128            # lane-dense output slab width
MAX_BATCH_TILE = 2048    # rows per grid step; <3 MiB VMEM even at 2048
MIN_SPLIT_BATCH = 256    # above this, split batch into >=2 grid steps (v7x megacore)


def _round_up(x, m):
    return ((x + m - 1) // m) * m


def _default_compute_dtype():
    # bf16 matmul inputs + f32 accumulation everywhere: the MXU is bf16-native
    # on v5e/v6e/v7x, and tanh/bias/epilogue run in f32 regardless.
    return jnp.bfloat16


# ----------------------------------------------------------------------------
# Fused-heads kernel:
#   x -> tanh(x@W1+b1) -> tanh(.@W2+b2) -> .@W3+b3 [-> sigmoid on masked cols]
# bias_ref rows: 0=b1 (width hid), 1=b2 (hid), 2=b3 (128), 3=sigmoid mask (128)
# Output: (TB, 128) f32 slab; the wrapper slices per-head columns.
# ----------------------------------------------------------------------------
def _fused_heads_kernel(x_ref, w1_ref, w2_ref, w3_ref, bias_ref, o_ref, *,
                        has_sigmoid):
    hid = w1_ref.shape[1]
    cdt = w1_ref.dtype                       # compute dtype (bf16 by default)

    b1 = bias_ref[0:1, 0:hid]
    b2 = bias_ref[1:2, 0:hid]
    b3 = bias_ref[2:3, 0:OUT_PAD]

    x = x_ref[...]                           # already compute dtype; no cast
    h1 = jnp.tanh(
        jnp.dot(x, w1_ref[...], preferred_element_type=jnp.float32) + b1)
    h2 = jnp.tanh(
        jnp.dot(h1.astype(cdt), w2_ref[...],
                preferred_element_type=jnp.float32) + b2)
    z = jnp.dot(h2.astype(cdt), w3_ref[...],
                preferred_element_type=jnp.float32) + b3

    if has_sigmoid:
        # sigmoid(z) = 0.5*(1+tanh(z/2)): one EUP push per element; vsel
        # column-select keeps the epilogue lane-dense and NaN-safe.
        sig = 0.5 * (1.0 + jnp.tanh(0.5 * z))
        z = jnp.where(bias_ref[3:4, 0:OUT_PAD] > 0.5, sig, z)

    o_ref[...] = z.astype(o_ref.dtype)


def fused_heads_forward(state, packed, has_sigmoid):
    """One pallas_call evaluating ALL heads; returns a (B, 128) f32 slab."""
    B, state_dim = state.shape
    w1, w2, w3, bias = packed["w1"], packed["w2"], packed["w3"], packed["bias"]

    b_pad = _round_up(B, 8)
    if b_pad >= MIN_SPLIT_BATCH:
        # >= 2 grid steps so ("parallel",) can shard across both v7x TCs.
        tb = min(MAX_BATCH_TILE, _round_up(pl.cdiv(b_pad, 2), 8))
    else:
        tb = min(MAX_BATCH_TILE, b_pad)
    grid = (pl.cdiv(B, tb),)

    kernel = functools.partial(_fused_heads_kernel, has_sigmoid=has_sigmoid)
    return pl.pallas_call(
        kernel,
        out_shape=jax.ShapeDtypeStruct((B, OUT_PAD), jnp.float32),
        grid=grid,
        in_specs=[
            pl.BlockSpec((tb, state_dim), lambda i: (i, 0)),   # x: batch-tiled
            pl.BlockSpec(w1.shape, lambda i: (0, 0)),          # weights resident
            pl.BlockSpec(w2.shape, lambda i: (0, 0)),
            pl.BlockSpec(w3.shape, lambda i: (0, 0)),
            pl.BlockSpec(bias.shape, lambda i: (0, 0)),        # b1|b2|b3|mask
        ],
        out_specs=pl.BlockSpec((tb, OUT_PAD), lambda i: (i, 0)),
        compiler_params=pltpu.CompilerParams(
            dimension_semantics=("parallel",)),
    )(state.astype(w1.dtype), w1, w2, w3, bias)


# ----------------------------------------------------------------------------
# Parameter init (matches nn.Linear default: U(-1/sqrt(fan_in), 1/sqrt(fan_in)))
# Weights stored (in_features, out_features); biases (1, out_features).
# ----------------------------------------------------------------------------
def _init_linear(key, fan_in, fan_out):
    kw, kb = jax.random.split(key)
    bound = float(fan_in) ** -0.5
    w = jax.random.uniform(kw, (fan_in, fan_out), jnp.float32, -bound, bound)
    b = jax.random.uniform(kb, (1, fan_out), jnp.float32, -bound, bound)
    return w, b


def _init_mlp3(key, in_dim, hidden, out_dim):
    k1, k2, k3 = jax.random.split(key, 3)
    w1, b1 = _init_linear(k1, in_dim, hidden)
    w2, b2 = _init_linear(k2, hidden, hidden)
    w3, b3 = _init_linear(k3, hidden, out_dim)
    return (w1, b1, w2, b2, w3, b3)


def _pack_heads(heads, state_dim, compute_dtype):
    """Pack per-head MLP params into one fused (block-diagonal) MLP."""
    H = len(heads)
    hid = HIDDEN * H
    total_out = sum(out_dim for _, _, out_dim, _ in heads)
    assert total_out <= OUT_PAD, "fused head outputs exceed one 128-lane slab"
    W = max(hid, OUT_PAD)

    w1 = jnp.zeros((state_dim, hid), jnp.float32)
    w2 = jnp.zeros((hid, hid), jnp.float32)
    w3 = jnp.zeros((hid, OUT_PAD), jnp.float32)
    bias = jnp.zeros((4, W), jnp.float32)      # rows: b1 | b2 | b3 | sig-mask

    head_cols = {}
    has_sigmoid = False
    col = 0
    for h, (name, params, out_dim, use_sigmoid) in enumerate(heads):
        hw1, hb1, hw2, hb2, hw3, hb3 = params
        r0 = h * HIDDEN
        w1 = w1.at[:, r0:r0 + HIDDEN].set(hw1)
        bias = bias.at[0, r0:r0 + HIDDEN].set(hb1[0])
        w2 = w2.at[r0:r0 + HIDDEN, r0:r0 + HIDDEN].set(hw2)   # block-diagonal
        bias = bias.at[1, r0:r0 + HIDDEN].set(hb2[0])
        w3 = w3.at[r0:r0 + HIDDEN, col:col + out_dim].set(hw3)
        bias = bias.at[2, col:col + out_dim].set(hb3[0])
        if use_sigmoid:
            bias = bias.at[3, col:col + out_dim].set(1.0)
            has_sigmoid = True
        head_cols[name] = (col, out_dim)
        col += out_dim

    packed = dict(w1=w1.astype(compute_dtype), w2=w2.astype(compute_dtype),
                  w3=w3.astype(compute_dtype), bias=bias)
    return packed, head_cols, has_sigmoid


# ----------------------------------------------------------------------------
# Distribution glue (wrapper-side jnp; matches torch Categorical / diag MVN)
# ----------------------------------------------------------------------------
def _nan_to_num(x, fill):
    return jnp.nan_to_num(x, nan=fill, posinf=fill, neginf=fill)


def _safe_logits(logits):
    # torch path clamps non-finite softmax probs to 1e-8; equivalent guard on
    # logits (identical to Categorical(probs) for finite activations).
    return _nan_to_num(logits, jnp.log(1e-8))


def _cat_logp(logits, idx):
    lsm = jax.nn.log_softmax(logits, axis=-1)
    return jnp.take_along_axis(lsm, idx[:, None], axis=-1)[:, 0]


def _cat_entropy(logits):
    lsm = jax.nn.log_softmax(logits, axis=-1)
    return -jnp.sum(jnp.exp(lsm) * lsm, axis=-1)


def _diag_gauss_logp(x, mean, var):
    return -0.5 * jnp.sum((x - mean) ** 2 / var + jnp.log(var)
                          + jnp.log(2.0 * jnp.pi), axis=-1)


# ----------------------------------------------------------------------------
# ActorCritic wrapper (mirrors the PyTorch module's act / evaluate)
# ----------------------------------------------------------------------------
class ActorCriticPallas:
    def __init__(self, state_dim, action_dim, has_continuous_action_space,
                 action_std_init, key, compute_dtype=None):
        self.state_dim = state_dim
        self.action_dim = action_dim
        self.has_continuous_action_space = has_continuous_action_space
        self.is_complex_discrete = False
        self.compute_dtype = (compute_dtype if compute_dtype is not None
                              else _default_compute_dtype())

        k_a, k_b, k_c = jax.random.split(key, 3)
        heads = []   # (name, params, out_dim, apply_sigmoid)
        if has_continuous_action_space:
            self.action_var = jnp.full((action_dim,),
                                       action_std_init * action_std_init,
                                       dtype=jnp.float32)
            heads.append(("actor",
                          _init_mlp3(k_a, state_dim, HIDDEN, action_dim),
                          action_dim, True))
        elif action_dim == 3:
            heads.append(("actor", _init_mlp3(k_a, state_dim, HIDDEN, 3),
                          3, False))
        else:
            self.is_complex_discrete = True
            N = action_dim - 3
            heads.append(("side", _init_mlp3(k_a, state_dim, HIDDEN, 3),
                          3, False))
            heads.append(("stake", _init_mlp3(k_b, state_dim, HIDDEN, N),
                          N, False))
        heads.append(("critic", _init_mlp3(k_c, state_dim, HIDDEN, 1),
                      1, False))

        self.packed, self.head_cols, self.has_sigmoid = _pack_heads(
            heads, state_dim, self.compute_dtype)

    def set_action_std(self, new_action_std):
        if self.has_continuous_action_space:
            self.action_var = jnp.full((self.action_dim,),
                                       new_action_std * new_action_std,
                                       jnp.float32)

    # One fused pallas_call -> dict of per-head outputs (column slices).
    def _heads(self, state):
        slab = fused_heads_forward(state, self.packed, self.has_sigmoid)
        return {name: slab[:, off:off + w]
                for name, (off, w) in self.head_cols.items()}

    # --- act -----------------------------------------------------------------
    def act(self, state, key):
        h = self._heads(state)
        val = h["critic"]                                        # (B, 1)
        if self.has_continuous_action_space:
            mean = _nan_to_num(h["actor"], 0.0)                  # sigmoid'd in kernel
            std = jnp.sqrt(self.action_var)
            noise = jax.random.normal(key, mean.shape, jnp.float32)
            action = mean + noise * std
            logp = _diag_gauss_logp(action, mean, self.action_var)
            return action, logp, val
        if not self.is_complex_discrete:
            logits = _safe_logits(h["actor"])
            action = jax.random.categorical(key, logits, axis=-1)
            logp = _cat_logp(logits, action)
            return action, logp, val
        k1, k2 = jax.random.split(key)
        side_lg = _safe_logits(h["side"])
        stake_lg = _safe_logits(h["stake"])
        side_idx = jax.random.categorical(k1, side_lg, axis=-1)
        stake_idx = jax.random.categorical(k2, stake_lg, axis=-1)
        logp = _cat_logp(side_lg, side_idx) + _cat_logp(stake_lg, stake_idx)
        action = jnp.stack([side_idx, stake_idx]).astype(jnp.int32)  # (2, B)
        return action, logp, val

    # --- evaluate ------------------------------------------------------------
    def evaluate(self, state, action):
        h = self._heads(state)
        vals = h["critic"]
        if self.has_continuous_action_space:
            mean = _nan_to_num(h["actor"], 0.0)
            logp = _diag_gauss_logp(action, mean, self.action_var)
            ent = 0.5 * jnp.sum(jnp.log(2.0 * jnp.pi * jnp.e * self.action_var))
            ent = jnp.full((state.shape[0],), ent, jnp.float32)
            return logp, vals, ent
        if not self.is_complex_discrete:
            logits = _safe_logits(h["actor"])
            idx = action.astype(jnp.int32)
            return _cat_logp(logits, idx), vals, _cat_entropy(logits)
        side_idx = action[:, 0].astype(jnp.int32)
        stake_idx = action[:, 1].astype(jnp.int32)
        side_lg = _safe_logits(h["side"])
        stake_lg = _safe_logits(h["stake"])
        logp = _cat_logp(side_lg, side_idx) + _cat_logp(stake_lg, stake_idx)
        ent = _cat_entropy(side_lg) + _cat_entropy(stake_lg)
        return logp, vals, ent


# ----------------------------------------------------------------------------
if __name__ == "__main__":
    key = jax.random.PRNGKey(0)
    k_p1, k_p2, k_p3, k_s, k_a1, k_a2, k_a3 = jax.random.split(key, 7)

    state_dim, batch = 32, 8
    state = jax.random.normal(k_s, (batch, state_dim), dtype=jnp.float32)

    # 1) simple discrete actor (action_dim == 3): fused [actor(3) | critic(1)]
    m_disc = ActorCriticPallas(state_dim, 3, False, 0.6, k_p1)
    a, lp, v = m_disc.act(state, k_a1)
    lp_e, v_e, ent_e = m_disc.evaluate(state, a)

    # 2) continuous actor: fused [sigmoid-mean(6) | critic(1)]
    m_cont = ActorCriticPallas(state_dim, 6, True, 0.6, k_p2)
    ac, lpc, vc = m_cont.act(state, k_a2)
    lpc_e, vc_e, entc_e = m_cont.evaluate(state, ac)

    # 3) complex discrete (action_dim = 8): fused [side(3) | stake(5) | critic(1)]
    m_cplx = ActorCriticPallas(state_dim, 8, False, 0.6, k_p3)
    ax, lpx, vx = m_cplx.act(state, k_a3)
    lpx_e, vx_e, entx_e = m_cplx.evaluate(state, ax.T)

    jax.block_until_ready((a, lp, v, lp_e, v_e, ent_e,
                           ac, lpc, vc, lpc_e, vc_e, entc_e,
                           ax, lpx, vx, lpx_e, vx_e, entx_e))

    assert a.shape == (batch,) and v.shape == (batch, 1)
    assert ac.shape == (batch, 6) and vc_e.shape == (batch, 1)
    assert ax.shape == (2, batch) and entx_e.shape == (batch,)
    assert lp.shape == (batch,) and lpx_e.shape == (batch,)
    print("KERNEL_OK")
</pallas_src>

<mosaic_0001>
module attributes {stable_mosaic.version = 11 : i64} {
  func.func @_fused_heads_kernel(%arg0: i32, %arg1: memref<8x32xbf16, #tpu.memory_space<vmem>>, %arg2: memref<32x128xbf16, #tpu.memory_space<vmem>>, %arg3: memref<128x128xbf16, #tpu.memory_space<vmem>>, %arg4: memref<128x128xbf16, #tpu.memory_space<vmem>>, %arg5: memref<4x128xf32, #tpu.memory_space<vmem>>, %arg6: memref<8x128xf32, #tpu.memory_space<vmem>>) attributes {dimension_semantics = [#tpu.dimension_semantics<parallel>], iteration_bounds = array<i64: 1>, scalar_prefetch = 0 : i64, scratch_operands = 0 : i64, tpu.core_type = #tpu.core_type<tc>, window_params = [{transform_indices = @transform_0, window_bounds = array<i64: 8, 32>}, {pipeline_mode = #tpu.pipeline_mode<synchronous>, transform_indices = @transform_1, window_bounds = array<i64: 32, 128>}, {pipeline_mode = #tpu.pipeline_mode<synchronous>, transform_indices = @transform_2, window_bounds = array<i64: 128, 128>}, {pipeline_mode = #tpu.pipeline_mode<synchronous>, transform_indices = @transform_3, window_bounds = array<i64: 128, 128>}, {pipeline_mode = #tpu.pipeline_mode<synchronous>, transform_indices = @transform_4, window_bounds = array<i64: 4, 128>}, {transform_indices = @transform_5, window_bounds = array<i64: 8, 128>}]} {
    %c0 = arith.constant 0 : index
    %c0_0 = arith.constant 0 : index
    %0 = vector.load %arg5[%c0, %c0_0] : memref<4x128xf32, #tpu.memory_space<vmem>>, vector<1x128xf32>
    %c1 = arith.constant 1 : index
    %c0_1 = arith.constant 0 : index
    %1 = vector.load %arg5[%c1, %c0_1] : memref<4x128xf32, #tpu.memory_space<vmem>>, vector<1x128xf32>
    %c2 = arith.constant 2 : index
    %c0_2 = arith.constant 0 : index
    %2 = vector.load %arg5[%c2, %c0_2] : memref<4x128xf32, #tpu.memory_space<vmem>>, vector<1x128xf32>
    %c0_3 = arith.constant 0 : index
    %c0_4 = arith.constant 0 : index
    %3 = vector.load %arg1[%c0_3, %c0_4] : memref<8x32xbf16, #tpu.memory_space<vmem>>, vector<8x32xbf16>
    %c0_5 = arith.constant 0 : index
    %c0_6 = arith.constant 0 : index
    %4 = vector.load %arg2[%c0_5, %c0_6] : memref<32x128xbf16, #tpu.memory_space<vmem>>, vector<32x128xbf16>
    %cst = arith.constant dense<0.000000e+00> : vector<8x128xf32>
    %5 = tpu.matmul %3, %4, %cst {dimension_numbers = #tpu.dot_dimension_numbers<[1], [0], [0], [1], [0, 0, 1, 1], [], []>} : vector<8x32xbf16>, vector<32x128xbf16>, vector<8x128xf32> -> vector<8x128xf32>
    %6 = vector.broadcast %0 : vector<1x128xf32> to vector<8x128xf32>
    %7 = arith.addf %5, %6 : vector<8x128xf32>
    %8 = math.tanh %7 : vector<8x128xf32>
    %9 = arith.truncf %8 : vector<8x128xf32> to vector<8x128xbf16>
    %c0_7 = arith.constant 0 : index
    %c0_8 = arith.constant 0 : index
    %10 = vector.load %arg3[%c0_7, %c0_8] : memref<128x128xbf16, #tpu.memory_space<vmem>>, vector<128x128xbf16>
    %cst_9 = arith.constant dense<0.000000e+00> : vector<8x128xf32>
    %11 = tpu.matmul %9, %10, %cst_9 {dimension_numbers = #tpu.dot_dimension_numbers<[1], [0], [0], [1], [0, 0, 1, 1], [], []>} : vector<8x128xbf16>, vector<128x128xbf16>, vector<8x128xf32> -> vector<8x128xf32>
    %12 = vector.broadcast %1 : vector<1x128xf32> to vector<8x128xf32>
    %13 = arith.addf %11, %12 : vector<8x128xf32>
    %14 = math.tanh %13 : vector<8x128xf32>
    %15 = arith.truncf %14 : vector<8x128xf32> to vector<8x128xbf16>
    %c0_10 = arith.constant 0 : index
    %c0_11 = arith.constant 0 : index
    %16 = vector.load %arg4[%c0_10, %c0_11] : memref<128x128xbf16, #tpu.memory_space<vmem>>, vector<128x128xbf16>
    %cst_12 = arith.constant dense<0.000000e+00> : vector<8x128xf32>
    %17 = tpu.matmul %15, %16, %cst_12 {dimension_numbers = #tpu.dot_dimension_numbers<[1], [0], [0], [1], [0, 0, 1, 1], [], []>} : vector<8x128xbf16>, vector<128x128xbf16>, vector<8x128xf32> -> vector<8x128xf32>
    %18 = vector.broadcast %2 : vector<1x128xf32> to vector<8x128xf32>
    %19 = arith.addf %17, %18 : vector<8x128xf32>
    %c0_13 = arith.constant 0 : index
    %c0_14 = arith.constant 0 : index
    %20 = vector.load %arg6[%c0_13, %c0_14] : memref<8x128xf32, #tpu.memory_space<vmem>>, vector<8x128xf32>
    tpu.vector_store %arg6[%c0_13, %c0_14], %19 {strides = array<i32>} : memref<8x128xf32, #tpu.memory_space<vmem>>, vector<8x128xf32>,
    return
  }
  func.func @transform_0(%arg0: i32) -> (i32, i32) {
    %c0_i32 = arith.constant 0 : i32
    %c0_i32_0 = arith.constant 0 : i32
    return %arg0, %c0_i32 : i32, i32
  }
  func.func @transform_1(%arg0: i32) -> (i32, i32) {
    %c0_i32 = arith.constant 0 : i32
    %c0_i32_0 = arith.constant 0 : i32
    %c0_i32_1 = arith.constant 0 : i32
    return %c0_i32, %c0_i32_0 : i32, i32
  }
  func.func @transform_2(%arg0: i32) -> (i32, i32) {
    %c0_i32 = arith.constant 0 : i32
    %c0_i32_0 = arith.constant 0 : i32
    %c0_i32_1 = arith.constant 0 : i32
    return %c0_i32, %c0_i32_0 : i32, i32
  }
  func.func @transform_3(%arg0: i32) -> (i32, i32) {
    %c0_i32 = arith.constant 0 : i32
    %c0_i32_0 = arith.constant 0 : i32
    %c0_i32_1 = arith.constant 0 : i32
    return %c0_i32, %c0_i32_0 : i32, i32
  }
  func.func @transform_4(%arg0: i32) -> (i32, i32) {
    %c0_i32 = arith.constant 0 : i32
    %c0_i32_0 = arith.constant 0 : i32
    %c0_i32_1 = arith.constant 0 : i32
    return %c0_i32, %c0_i32_0 : i32, i32
  }
  func.func @transform_5(%arg0: i32) -> (i32, i32) {
    %c0_i32 = arith.constant 0 : i32
    %c0_i32_0 = arith.constant 0 : i32
    return %arg0, %c0_i32 : i32, i32
  }
}

</mosaic_0001>

<llo_original>
// kernel: tpu_custom_call.1
$region0: #{tpu_custom_call.1}
  #allocation0 [shape = 'u32[]', space=smem, size = 0x4, offset = 0x4, fixed_abs, tag = 'smem constant byte address 0x4 - core index']
  #allocation1 [shape = 'u32[144,128]{1,0:T(1,128)}', space=vmem, size = 0x12000, scoped, tag = 'internal scratch']
  %s0 = inlined_call_operand.hbm [shape: bf16[8,32], index: 0, kind: input, shape index: {}]
  %s1 = inlined_call_operand.hbm [shape: bf16[32,128], index: 1, kind: input, shape index: {}]
  %s2 = inlined_call_operand.hbm [shape: bf16[128,128], index: 2, kind: input, shape index: {}]
  %s3 = inlined_call_operand.hbm [shape: bf16[128,128], index: 3, kind: input, shape index: {}]
  %s4 = inlined_call_operand.vmem [shape: f32[4,128], index: 4, kind: input, shape index: {}]
  %s5 = inlined_call_operand.hbm [shape: f32[8,128], index: 5, kind: output, shape index: {}]
  %s6 = sld [smem:[#allocation0]]
  $region46: #{tpu_custom_call.1} parent=0
    _
  %s8 = ssub.s32 1, %s6
  %s9 = scalar_select 0, %s8, %s6
  $region1: #{tpu_custom_call.1} parent=0
    #allocation2 [shape = 'u8[2048]{0}', space=vmem, size = 0x800, scoped, tag = 'input window, operand 0, single buffered']
    #allocation3 [shape = 's32[1]{0}', space=sflag, size = 0x4, scoped, tag = 'scoped memory for tpu_custom_call.1']
    #allocation4 [shape = 's32[1]{0}', space=sflag, size = 0x4, scoped, tag = 'scoped memory for tpu_custom_call.1']
    #allocation5 [shape = 'u8[8192]{0}', space=vmem, size = 0x2000, scoped, tag = 'input window, operand 1, single buffered']
    #allocation6 [shape = 's32[1]{0}', space=sflag, size = 0x4, scoped, tag = 'scoped memory for tpu_custom_call.1']
    #allocation7 [shape = 'u8[32768]{0}', space=vmem, size = 0x8000, scoped, tag = 'input window, operand 2, single buffered']
    #allocation8 [shape = 'u8[32768]{0}', space=vmem, size = 0x8000, scoped, tag = 'input window, operand 3, single buffered']
    #allocation9 [shape = 's32[1]{0}', space=sflag, size = 0x4, scoped, tag = 'scoped memory for tpu_custom_call.1']
    #allocation10 [shape = 'u8[4096]{0}', space=vmem, size = 0x1000, scoped, tag = 'output window, operand 0, single buffered']
    %10 = vsyncpa [#allocation3], 0
    %11 = vsyncpa [#allocation6], 0
    %12 = vsyncpa [#allocation9], 0
    %13 = vsyncpa [#allocation4], 0
    // Predicated region
    $region2: #{tpu_custom_call.1} parent=1 // pred_check
      _
    $region3: #{tpu_custom_call.1} parent=1 // pred_check_branch
      %15 = sbr.rel (0) target = $region5
    $region4: #{tpu_custom_call.1} parent=1 // pred_region
      %s17 = ssub.s32 64, 64
      %18 = vsyncadd [#allocation3], %s17
      %s20 = sshll.u32 [#allocation2], 4
      %s21 = int_to_ptr.vmem [resolvable:$true] %s20
      %23 = dma.hbm_to_vmem [thread:$0]  %s0, 64, %s21, [#allocation3]
    $region5: #{tpu_custom_call.1} parent=1 // pred_fallthru
      _
    // Predicated region
    $region6: #{tpu_custom_call.1} parent=1 // pred_check
      _
    $region7: #{tpu_custom_call.1} parent=1 // pred_check_branch
      %25 = sbr.rel (0) target = $region9
    $region8: #{tpu_custom_call.1} parent=1 // pred_region
      %s27 = ssub.s32 256, 256
      %28 = vsyncadd [#allocation6], %s27
      %s29 = sshll.u32 [#allocation5], 4
      %s30 = int_to_ptr.vmem [resolvable:$true] %s29
      %35 = dma.hbm_to_vmem [thread:$0]  %s1, 256, %s30, [#allocation6], 64, 64, 4
    $region9: #{tpu_custom_call.1} parent=1 // pred_fallthru
      _
    // Predicated region
    $region10: #{tpu_custom_call.1} parent=1 // pred_check
      _
    $region11: #{tpu_custom_call.1} parent=1 // pred_check_branch
      %37 = sbr.rel (0) target = $region13
    $region12: #{tpu_custom_call.1} parent=1 // pred_region
      %s39 = ssub.s32 1024, 1024
      %40 = vsyncadd [#allocation6], %s39
      %s41 = sshll.u32 [#allocation7], 4
      %s42 = int_to_ptr.vmem [resolvable:$true] %s41
      %47 = dma.hbm_to_vmem [thread:$0]  %s2, 1024, %s42, [#allocation6], 64, 64, 4
    $region13: #{tpu_custom_call.1} parent=1 // pred_fallthru
      _
    // Predicated region
    $region14: #{tpu_custom_call.1} parent=1 // pred_check
      _
    $region15: #{tpu_custom_call.1} parent=1 // pred_check_branch
      %49 = sbr.rel (0) target = $region17
    $region16: #{tpu_custom_call.1} parent=1 // pred_region
      %s51 = ssub.s32 1024, 1024
      %52 = vsyncadd [#allocation9], %s51
      %s53 = sshll.u32 [#allocation8], 4
      %s54 = int_to_ptr.vmem [resolvable:$true] %s53
      %59 = dma.hbm_to_vmem [thread:$0]  %s3, 1024, %s54, [#allocation9], 64, 64, 4
    $region17: #{tpu_custom_call.1} parent=1 // pred_fallthru
      _
    // Predicated region
    $region18: #{tpu_custom_call.1} parent=1 // pred_check
      _
    $region19: #{tpu_custom_call.1} parent=1 // pred_check_branch
      %61 = sbr.rel (0) target = $region21
    $region20: #{tpu_custom_call.1} parent=1 // pred_region
      _
    $region21: #{tpu_custom_call.1} parent=1 // pred_fallthru
      _
    // Predicated region
    $region22: #{tpu_custom_call.1} parent=1 // pred_check
      _
    $region23: #{tpu_custom_call.1} parent=1 // pred_check_branch
      %63 = sbr.rel (0) target = $region25
    $region24: #{tpu_custom_call.1} parent=1 // pred_region
      %64 = dma.done [#allocation3], 64
    $region25: #{tpu_custom_call.1} parent=1 // pred_fallthru
      _
    // Predicated region
    $region26: #{tpu_custom_call.1} parent=1 // pred_check
      _
    $region27: #{tpu_custom_call.1} parent=1 // pred_check_branch
      %66 = sbr.rel (0) target = $region29
    $region28: #{tpu_custom_call.1} parent=1 // pred_region
      %67 = dma.done [#allocation6], 256
    $region29: #{tpu_custom_call.1} parent=1 // pred_fallthru
      _
    // Predicated region
    $region30: #{tpu_custom_call.1} parent=1 // pred_check
      _
    $region31: #{tpu_custom_call.1} parent=1 // pred_check_branch
      %69 = sbr.rel (0) target = $region33
    $region32: #{tpu_custom_call.1} parent=1 // pred_region
      %70 = dma.done [#allocation6], 1024
    $region33: #{tpu_custom_call.1} parent=1 // pred_fallthru
      _
    // Predicated region
    $region34: #{tpu_custom_call.1} parent=1 // pred_check
      _
    $region35: #{tpu_custom_call.1} parent=1 // pred_check_branch
      %72 = sbr.rel (0) target = $region37
    $region36: #{tpu_custom_call.1} parent=1 // pred_region
      %73 = dma.done [#allocation9], 1024
    $region37: #{tpu_custom_call.1} parent=1 // pred_fallthru
      _
    %v75 = vld [vmem:[%s4] sm:$0x1]
    %v76 = vld [vmem:[%s4 + $0x1] sm:$0x1]
    %v77 = vld [vmem:[%s4 + $0x2] sm:$0x1]
    %v78 = vld [vmem:[#allocation2] sm:$0xf]
    %v79 = vld [vmem:[#allocation5] sm:$0xf]
    %v80 = vld [vmem:[#allocation5 + $0x4] sm:$0xf]
    %v81 = vld [vmem:[#allocation5 + $0x8] sm:$0xf]
    %v82 = vld [vmem:[#allocation5 + $0xc] sm:$0xf]
    %v83 = vlaneseq
    %v84 = vshrl.u32 %v83, 7
    %v85 = vsub.s32 0, %v84
    %v86 = vrot.slane %v75, %v85
    %v91 = vunpack.c.l.b16 %v79
    %v92 = vunpack.c.l.b16 %v80
    %v93 = vunpack.c.l.b16 %v81
    %v94 = vunpack.c.l.b16 %v82
    %v95 = vpack.c.b16 %v92, %v91
    %v96 = vpack.c.b16 %v94, %v93
    %vm99 = vcmask 261120
    %v101 = vsel %vm99, %v78, 0
    %103 = vmatprep.subr.bf16.mxu0 0
    %104 = vmatpush1.bf16.msra.mxu0 %v95
    %105 = vmatprep.subr.bf16.mxu0 0
    %106 = vmatpush1.bf16.msra.mxu0 %v96
    %107 = vmatprep.subr.bf16.mxu0 0
    %108 = vmatpush1.bf16.msra.mxu0 0
    %109 = vmatprep.subr.bf16.mxu0 0
    %110 = vmatpush1.bf16.msra.mxu0 0
    %111 = vmatprep.subr.bf16.mxu0 0
    %112 = vmatpush1.bf16.msra.mxu0 0
    %113 = vmatprep.subr.bf16.mxu0 0
    %114 = vmatpush1.bf16.msra.mxu0 0
    %115 = vmatprep.subr.bf16.mxu0 0
    %116 = vmatpush1.bf16.msra.mxu0 0
    %117 = vmatprep.subr.bf16.mxu0 0
    %118 = vmatpush1.bf16.msra.mxu0 0
    %119 = vmatprep.subr.bf16.mxu0 0
    %120 = vmatpush1.bf16.msra.mxu0 0
    %121 = vmatprep.subr.bf16.mxu0 0
    %122 = vmatpush1.bf16.msra.mxu0 0
    %123 = vmatprep.subr.bf16.mxu0 0
    %124 = vmatpush1.bf16.msra.mxu0 0
    %125 = vmatprep.subr.bf16.mxu0 0
    %126 = vmatpush1.bf16.msra.mxu0 0
    %127 = vmatprep.subr.bf16.mxu0 0
    %128 = vmatpush1.bf16.msra.mxu0 0
    %129 = vmatprep.subr.bf16.mxu0 0
    %130 = vmatpush1.bf16.msra.mxu0 0
    %131 = vmatprep.subr.bf16.mxu0 0
    %132 = vmatpush1.bf16.msra.mxu0 0
    %133 = vmatprep.subr.bf16.mxu0 0
    %134 = vmatpush1.bf16.msra.mxu0 0
    %135 = vmatprep.mubr.bf16.mxu0 0
    %136 = vmatmul.mubr.bf16.gmra.mrb[0].mxu0 %v101
    %v137 = vpop.f32.mrb[0].mxu0
    %v138 = vadd.f32 %v86, %v137
    %v139 = vpop.f32.mrb[0].mxu0
    %v140 = vpop.f32.mrb[0].mxu0
    %v141 = vpop.f32.mrb[0].mxu0
    %142 = vdwg.mxu0
    %v143 = vtanh.pop %v138
    %v144 = vpack.c.bf16 %v143, %v143
    %v145 = vld [vmem:[#allocation7] sm:$0xf]
    %v146 = vld [vmem:[#allocation7 + $0x4] sm:$0xf]
    %v147 = vld [vmem:[#allocation7 + $0x8] sm:$0xf]
    %v148 = vld [vmem:[#allocation7 + $0xc] sm:$0xf]
    %v149 = vld [vmem:[#allocation7 + $0x10] sm:$0xf]
    %v150 = vld [vmem:[#allocation7 + $0x14] sm:$0xf]
    %v151 = vld [vmem:[#allocation7 + $0x18] sm:$0xf]
    %v152 = vld [vmem:[#allocation7 + $0x1c] sm:$0xf]
    %v153 = vld [vmem:[#allocation7 + $0x20] sm:$0xf]
    %v154 = vld [vmem:[#allocation7 + $0x24] sm:$0xf]
    %v155 = vld [vmem:[#allocation7 + $0x28] sm:$0xf]
    %v156 = vld [vmem:[#allocation7 + $0x2c] sm:$0xf]
    %v157 = vld [vmem:[#allocation7 + $0x30] sm:$0xf]
    %v158 = vld [vmem:[#allocation7 + $0x34] sm:$0xf]
    %v159 = vld [vmem:[#allocation7 + $0x38] sm:$0xf]
    %v160 = vld [vmem:[#allocation7 + $0x3c] sm:$0xf]
    %v161 = vlaneseq
    %v162 = vshrl.u32 %v161, 7
    %v163 = vsub.s32 0, %v162
    %v164 = vrot.slane %v76, %v163
    %v181 = vunpack.c.l.b16 %v145
    %v182 = vunpack.c.l.b16 %v146
    %v183 = vunpack.c.l.b16 %v147
    %v184 = vunpack.c.l.b16 %v148
    %v185 = vunpack.c.l.b16 %v149
    %v186 = vunpack.c.l.b16 %v150
    %v187 = vunpack.c.l.b16 %v151
    %v188 = vunpack.c.l.b16 %v152
    %v189 = vunpack.c.l.b16 %v153
    %v190 = vunpack.c.l.b16 %v154
    %v191 = vunpack.c.l.b16 %v155
    %v192 = vunpack.c.l.b16 %v156
    %v193 = vunpack.c.l.b16 %v157
    %v194 = vunpack.c.l.b16 %v158
    %v195 = vunpack.c.l.b16 %v159
    %v196 = vunpack.c.l.b16 %v160
    %v197 = vpack.c.b16 %v182, %v181
    %v198 = vpack.c.b16 %v184, %v183
    %v199 = vpack.c.b16 %v186, %v185
    %v200 = vpack.c.b16 %v188, %v187
    %v201 = vpack.c.b16 %v190, %v189
    %v202 = vpack.c.b16 %v192, %v191
    %v203 = vpack.c.b16 %v194, %v193
    %v204 = vpack.c.b16 %v196, %v195
    %213 = vmatprep.subr.bf16.mxu0 0
    %214 = vmatpush1.bf16.msra.mxu0 %v197
    %215 = vmatprep.subr.bf16.mxu0 0
    %216 = vmatpush1.bf16.msra.mxu0 %v198
    %217 = vmatprep.subr.bf16.mxu0 0
    %218 = vmatpush1.bf16.msra.mxu0 %v199
    %219 = vmatprep.subr.bf16.mxu0 0
    %220 = vmatpush1.bf16.msra.mxu0 %v200
    %221 = vmatprep.subr.bf16.mxu0 0
    %222 = vmatpush1.bf16.msra.mxu0 %v201
    %223 = vmatprep.subr.bf16.mxu0 0
    %224 = vmatpush1.bf16.msra.mxu0 %v202
    %225 = vmatprep.subr.bf16.mxu0 0
    %226 = vmatpush1.bf16.msra.mxu0 %v203
    %227 = vmatprep.subr.bf16.mxu0 0
    %228 = vmatpush1.bf16.msra.mxu0 %v204
    %229 = vmatprep.subr.bf16.mxu0 0
    %230 = vmatpush1.bf16.msra.mxu0 0
    %231 = vmatprep.subr.bf16.mxu0 0
    %232 = vmatpush1.bf16.msra.mxu0 0
    %233 = vmatprep.subr.bf16.mxu0 0
    %234 = vmatpush1.bf16.msra.mxu0 0
    %235 = vmatprep.subr.bf16.mxu0 0
    %236 = vmatpush1.bf16.msra.mxu0 0
    %237 = vmatprep.subr.bf16.mxu0 0
    %238 = vmatpush1.bf16.msra.mxu0 0
    %239 = vmatprep.subr.bf16.mxu0 0
    %240 = vmatpush1.bf16.msra.mxu0 0
    %241 = vmatprep.subr.bf16.mxu0 0
    %242 = vmatpush1.bf16.msra.mxu0 0
    %243 = vmatprep.subr.bf16.mxu0 0
    %244 = vmatpush1.bf16.msra.mxu0 0
    %245 = vmatprep.mubr.bf16.mxu0 0
    %246 = vmatmul.mubr.bf16.gmra.mrb[0].mxu0 %v144
    %v247 = vpop.f32.mrb[0].mxu0
    %v248 = vadd.f32 %v164, %v247
    %v249 = vpop.f32.mrb[0].mxu0
    %v250 = vpop.f32.mrb[0].mxu0
    %v251 = vpop.f32.mrb[0].mxu0
    %252 = vdwg.mxu0
    %v253 = vtanh.pop %v248
    %v254 = vpack.c.bf16 %v253, %v253
    %v255 = vld [vmem:[#allocation8] sm:$0xf]
    %v256 = vld [vmem:[#allocation8 + $0x4] sm:$0xf]
    %v257 = vld [vmem:[#allocation8 + $0x8] sm:$0xf]
    %v258 = vld [vmem:[#allocation8 + $0xc] sm:$0xf]
    %v259 = vld [vmem:[#allocation8 + $0x10] sm:$0xf]
    %v260 = vld [vmem:[#allocation8 + $0x14] sm:$0xf]
    %v261 = vld [vmem:[#allocation8 + $0x18] sm:$0xf]
    %v262 = vld [vmem:[#allocation8 + $0x1c] sm:$0xf]
    %v263 = vld [vmem:[#allocation8 + $0x20] sm:$0xf]
    %v264 = vld [vmem:[#allocation8 + $0x24] sm:$0xf]
    %v265 = vld [vmem:[#allocation8 + $0x28] sm:$0xf]
    %v266 = vld [vmem:[#allocation8 + $0x2c] sm:$0xf]
    %v267 = vld [vmem:[#allocation8 + $0x30] sm:$0xf]
    %v268 = vld [vmem:[#allocation8 + $0x34] sm:$0xf]
    %v269 = vld [vmem:[#allocation8 + $0x38] sm:$0xf]
    %v270 = vld [vmem:[#allocation8 + $0x3c] sm:$0xf]
    %v271 = vlaneseq
    %v272 = vshrl.u32 %v271, 7
    %v273 = vsub.s32 0, %v272
    %v274 = vrot.slane %v77, %v273
    %v291 = vunpack.c.l.b16 %v255
    %v292 = vunpack.c.l.b16 %v256
    %v293 = vunpack.c.l.b16 %v257
    %v294 = vunpack.c.l.b16 %v258
    %v295 = vunpack.c.l.b16 %v259
    %v296 = vunpack.c.l.b16 %v260
    %v297 = vunpack.c.l.b16 %v261
    %v298 = vunpack.c.l.b16 %v262
    %v299 = vunpack.c.l.b16 %v263
    %v300 = vunpack.c.l.b16 %v264
    %v301 = vunpack.c.l.b16 %v265
    %v302 = vunpack.c.l.b16 %v266
    %v303 = vunpack.c.l.b16 %v267
    %v304 = vunpack.c.l.b16 %v268
    %v305 = vunpack.c.l.b16 %v269
    %v306 = vunpack.c.l.b16 %v270
    %v307 = vpack.c.b16 %v292, %v291
    %v308 = vpack.c.b16 %v294, %v293
    %v309 = vpack.c.b16 %v296, %v295
    %v310 = vpack.c.b16 %v298, %v297
    %v311 = vpack.c.b16 %v300, %v299
    %v312 = vpack.c.b16 %v302, %v301
    %v313 = vpack.c.b16 %v304, %v303
    %v314 = vpack.c.b16 %v306, %v305
    %323 = vmatprep.subr.bf16.mxu0 0
    %324 = vmatpush1.bf16.msra.mxu0 %v307
    %325 = vmatprep.subr.bf16.mxu0 0
    %326 = vmatpush1.bf16.msra.mxu0 %v308
    %327 = vmatprep.subr.bf16.mxu0 0
    %328 = vmatpush1.bf16.msra.mxu0 %v309
    %329 = vmatprep.subr.bf16.mxu0 0
    %330 = vmatpush1.bf16.msra.mxu0 %v310
    %331 = vmatprep.subr.bf16.mxu0 0
    %332 = vmatpush1.bf16.msra.mxu0 %v311
    %333 = vmatprep.subr.bf16.mxu0 0
    %334 = vmatpush1.bf16.msra.mxu0 %v312
    %335 = vmatprep.subr.bf16.mxu0 0
    %336 = vmatpush1.bf16.msra.mxu0 %v313
    %337 = vmatprep.subr.bf16.mxu0 0
    %338 = vmatpush1.bf16.msra.mxu0 %v314
    %339 = vmatprep.subr.bf16.mxu0 0
    %340 = vmatpush1.bf16.msra.mxu0 0
    %341 = vmatprep.subr.bf16.mxu0 0
    %342 = vmatpush1.bf16.msra.mxu0 0
    %343 = vmatprep.subr.bf16.mxu0 0
    %344 = vmatpush1.bf16.msra.mxu0 0
    %345 = vmatprep.subr.bf16.mxu0 0
    %346 = vmatpush1.bf16.msra.mxu0 0
    %347 = vmatprep.subr.bf16.mxu0 0
    %348 = vmatpush1.bf16.msra.mxu0 0
    %349 = vmatprep.subr.bf16.mxu0 0
    %350 = vmatpush1.bf16.msra.mxu0 0
    %351 = vmatprep.subr.bf16.mxu0 0
    %352 = vmatpush1.bf16.msra.mxu0 0
    %353 = vmatprep.subr.bf16.mxu0 0
    %354 = vmatpush1.bf16.msra.mxu0 0
    %355 = vmatprep.mubr.bf16.mxu0 0
    %356 = vmatmul.mubr.bf16.gmra.mrb[0].mxu0 %v254
    %v357 = vpop.f32.mrb[0].mxu0
    %v358 = vadd.f32 %v274, %v357
    %v359 = vpop.f32.mrb[0].mxu0
    %v360 = vpop.f32.mrb[0].mxu0
    %v361 = vpop.f32.mrb[0].mxu0
    %362 = vdwg.mxu0
    %363 = vst [vmem:[#allocation10] sm:$0xff] %v358
    // Predicated region
    $region38: #{tpu_custom_call.1} parent=1 // pred_check
      _
    $region39: #{tpu_custom_call.1} parent=1 // pred_check_branch
      %365 = sbr.rel (0) target = $region41
    $region40: #{tpu_custom_call.1} parent=1 // pred_region
      %s367 = ssub.s32 128, 128
      %368 = vsyncadd [#allocation4], %s367
      %s370 = sshll.u32 [#allocation10], 4
      %s371 = int_to_ptr.vmem [resolvable:$true] %s370
      %373 = dma.vmem_to_hbm [thread:$0]  %s371, 128, %s5, [#allocation4]
    $region41: #{tpu_custom_call.1} parent=1 // pred_fallthru
      _
    // Predicated region
    $region42: #{tpu_custom_call.1} parent=1 // pred_check
      _
    $region43: #{tpu_custom_call.1} parent=1 // pred_check_branch
      %375 = sbr.rel (0) target = $region45
    $region44: #{tpu_custom_call.1} parent=1 // pred_region
      %376 = dma.done [#allocation4], 128
    $region45: #{tpu_custom_call.1} parent=1 // pred_fallthru
      _
    %377 = vsyncpa [#allocation3], 1
    %378 = vsyncpa [#allocation6], 1
    %379 = vsyncpa [#allocation9], 1
    %380 = vsyncpa [#allocation4], 1

</llo_original>
